<compile_context>
chip_gen: v5e
topology: v5e:2x2
jax: 0.10.0
libtpu: 0.0.40
codegen_flags: <defaults>
</compile_context>

<pallas_src>
import functools

import jax
import jax.numpy as jnp
from jax.experimental import pallas as pl
from jax.experimental.pallas import tpu as pltpu


def _round_up(x, m):
    return (x + m - 1) // m * m


def _ffn_kernel(x_ref, w1_ref, b1_ref, w2_ref, b2_ref, o_ref):
    # x_ref:  (tm, D_in_p)      streamed row tile
    # w1_ref: (D_in_p, H_p)     resident weight
    # b1_ref: (1, H_p)
    # w2_ref: (H_p, D_out_p)    resident weight
    # b2_ref: (1, D_out_p)
    # o_ref:  (tm, D_out_p)

    # Layer 0: Linear + ReLU.  Native-dtype operands, f32 accumulation.
    h = jnp.dot(x_ref[...], w1_ref[...], preferred_element_type=jnp.float32)
    h = h + b1_ref[...].astype(jnp.float32)          # (tm, H_p) + (1, H_p)
    h = jnp.maximum(h, 0.0)

    # Layer 1 (last layer): Linear, no activation.  Cast hidden back to the
    # weight dtype so bf16 weights keep the bf16 MXU path (no-op for f32).
    y = jnp.dot(h.astype(w2_ref.dtype), w2_ref[...],
                preferred_element_type=jnp.float32)
    y = y + b2_ref[...].astype(jnp.float32)

    o_ref[...] = y.astype(o_ref.dtype)
    # TODO(synk): for very large hidden_dim, add an H-tiling grid axis
    # ("arbitrary") with an f32 accumulator scratch to bound VMEM on v7x.


@functools.partial(jax.jit, static_argnames=("tm",))
def ffn_forward(x, w1, b1, w2, b2, *, tm=256):
    """x: (..., D_in) -> (..., D_out), fused 2-layer MLP on TPU."""
    orig_shape = x.shape
    d_in = orig_shape[-1]
    h_dim = w1.shape[1]
    d_out = w2.shape[1]

    x2 = x.reshape(-1, d_in)
    m = x2.shape[0]

    # ---- pad feature dims to lane-dense multiples of 128 --------------------
    d_in_p = _round_up(d_in, 128)
    h_p = _round_up(h_dim, 128)
    d_out_p = _round_up(d_out, 128)

    # ---- pick row tile & pad rows --------------------------------------------
    tm_eff = min(tm, _round_up(m, 8))
    tm_eff = _round_up(tm_eff, 8)
    m_pad = _round_up(m, tm_eff)

    xp = jnp.pad(x2, ((0, m_pad - m), (0, d_in_p - d_in)))
    w1p = jnp.pad(w1, ((0, d_in_p - d_in), (0, h_p - h_dim)))
    b1p = jnp.pad(b1.reshape(1, h_dim), ((0, 0), (0, h_p - h_dim)))
    w2p = jnp.pad(w2, ((0, h_p - h_dim), (0, d_out_p - d_out)))
    b2p = jnp.pad(b2.reshape(1, d_out), ((0, 0), (0, d_out_p - d_out)))

    grid = (m_pad // tm_eff,)

    # ---- advisory cost estimate (true, un-padded terms) ----------------------
    itemsize = jnp.dtype(x.dtype).itemsize
    cost = pl.CostEstimate(
        flops=2 * m * (d_in * h_dim + h_dim * d_out),
        transcendentals=0,
        bytes_accessed=itemsize * (m * d_in + m * d_out
                                   + d_in * h_dim + h_dim * d_out
                                   + h_dim + d_out),
    )

    # ---- VMEM budget: resident weights + double-buffered x/out tiles --------
    vmem_bytes = (
        2 * (d_in_p * h_p + h_p * d_out_p + h_p + d_out_p) * itemsize  # weights/biases
        + 2 * tm_eff * d_in_p * itemsize                               # x tiles (2 bufs)
        + 2 * tm_eff * d_out_p * itemsize                              # out tiles (2 bufs)
        + tm_eff * h_p * 4                                             # f32 hidden
    )
    vmem_limit = int(min(max(2 * vmem_bytes, 16 * 1024 * 1024),
                         64 * 1024 * 1024))

    out = pl.pallas_call(
        _ffn_kernel,
        out_shape=jax.ShapeDtypeStruct((m_pad, d_out_p), x.dtype),
        grid_spec=pltpu.PrefetchScalarGridSpec(
            num_scalar_prefetch=0,
            grid=grid,
            in_specs=[
                pl.BlockSpec((tm_eff, d_in_p), lambda i: (i, 0)),   # x row tile
                pl.BlockSpec((d_in_p, h_p), lambda i: (0, 0)),      # W1 resident
                pl.BlockSpec((1, h_p), lambda i: (0, 0)),           # b1
                pl.BlockSpec((h_p, d_out_p), lambda i: (0, 0)),     # W2 resident
                pl.BlockSpec((1, d_out_p), lambda i: (0, 0)),       # b2
            ],
            out_specs=pl.BlockSpec((tm_eff, d_out_p), lambda i: (i, 0)),
        ),
        compiler_params=pltpu.CompilerParams(
            dimension_semantics=("parallel",),
            vmem_limit_bytes=vmem_limit,
        ),
        cost_estimate=cost,
    )(xp, w1p, b1p, w2p, b2p)

    out = out[:m, :d_out]
    return out.reshape(orig_shape[:-1] + (d_out,))


def init_ffn_params(key, input_dim, hidden_dim, output_dim):
    """Deterministic init mimicking nn.Linear defaults (U[-1/sqrt(fan_in), +]).

    Weights stored as (in_features, out_features), i.e. transposed vs PyTorch's
    (out, in), so the kernel computes x @ W.
    """
    k1, k2, k3, k4 = jax.random.split(key, 4)
    bnd1 = 1.0 / jnp.sqrt(input_dim)
    bnd2 = 1.0 / jnp.sqrt(hidden_dim)
    w1 = jax.random.uniform(k1, (input_dim, hidden_dim), jnp.float32, -bnd1, bnd1)
    b1 = jax.random.uniform(k2, (hidden_dim,), jnp.float32, -bnd1, bnd1)
    w2 = jax.random.uniform(k3, (hidden_dim, output_dim), jnp.float32, -bnd2, bnd2)
    b2 = jax.random.uniform(k4, (output_dim,), jnp.float32, -bnd2, bnd2)
    return w1, b1, w2, b2


def ffn_reference(x, w1, b1, w2, b2):
    h = jnp.maximum(x @ w1 + b1, 0.0)
    return h @ w2 + b2


if __name__ == "__main__":
    # Small shapes consistent with FFN(input_dim=32, hidden_dim=32,
    # output_dim=16, num_layers=2, basic_type='linear') applied to (B, S, D_in).
    B, S = 2, 8
    input_dim, hidden_dim, output_dim = 32, 32, 16

    key = jax.random.PRNGKey(0)
    kx, kp = jax.random.split(key)
    x = jax.random.normal(kx, (B, S, input_dim), jnp.float32)
    w1, b1, w2, b2 = init_ffn_params(kp, input_dim, hidden_dim, output_dim)

    out = ffn_forward(x, w1, b1, w2, b2)
    out = jax.block_until_ready(out)

    ref = ffn_reference(x, w1, b1, w2, b2)
    assert out.shape == (B, S, output_dim)
    assert jnp.allclose(out, ref, atol=1e-5, rtol=1e-5), "mismatch vs reference"

    print("KERNEL_OK")
</pallas_src>

<mosaic_0001>
module attributes {stable_mosaic.version = 11 : i64} {
  func.func @_ffn_kernel(%arg0: i32, %arg1: memref<16x128xf32, #tpu.memory_space<vmem>>, %arg2: memref<128x128xf32, #tpu.memory_space<vmem>>, %arg3: memref<1x128xf32, #tpu.memory_space<vmem>>, %arg4: memref<128x128xf32, #tpu.memory_space<vmem>>, %arg5: memref<1x128xf32, #tpu.memory_space<vmem>>, %arg6: memref<16x128xf32, #tpu.memory_space<vmem>>) attributes {dimension_semantics = [#tpu.dimension_semantics<parallel>], iteration_bounds = array<i64: 1>, scalar_prefetch = 0 : i64, scratch_operands = 0 : i64, tpu.core_type = #tpu.core_type<tc>, window_params = [{transform_indices = @transform_0, window_bounds = array<i64: 16, 128>}, {pipeline_mode = #tpu.pipeline_mode<synchronous>, transform_indices = @transform_1, window_bounds = array<i64: 128, 128>}, {pipeline_mode = #tpu.pipeline_mode<synchronous>, transform_indices = @transform_2, window_bounds = array<i64: 1, 128>}, {pipeline_mode = #tpu.pipeline_mode<synchronous>, transform_indices = @transform_3, window_bounds = array<i64: 128, 128>}, {pipeline_mode = #tpu.pipeline_mode<synchronous>, transform_indices = @transform_4, window_bounds = array<i64: 1, 128>}, {transform_indices = @transform_5, window_bounds = array<i64: 16, 128>}]} {
    %c0 = arith.constant 0 : index
    %c0_0 = arith.constant 0 : index
    %0 = vector.load %arg1[%c0, %c0_0] : memref<16x128xf32, #tpu.memory_space<vmem>>, vector<16x128xf32>
    %c0_1 = arith.constant 0 : index
    %c0_2 = arith.constant 0 : index
    %1 = vector.load %arg2[%c0_1, %c0_2] : memref<128x128xf32, #tpu.memory_space<vmem>>, vector<128x128xf32>
    %cst = arith.constant dense<0.000000e+00> : vector<16x128xf32>
    %2 = tpu.matmul %0, %1, %cst {dimension_numbers = #tpu.dot_dimension_numbers<[1], [0], [0], [1], [0, 0, 1, 1], [], []>} : vector<16x128xf32>, vector<128x128xf32>, vector<16x128xf32> -> vector<16x128xf32>
    %c0_3 = arith.constant 0 : index
    %c0_4 = arith.constant 0 : index
    %3 = vector.load %arg3[%c0_3, %c0_4] : memref<1x128xf32, #tpu.memory_space<vmem>>, vector<1x128xf32>
    %4 = vector.broadcast %3 : vector<1x128xf32> to vector<16x128xf32>
    %5 = arith.addf %2, %4 : vector<16x128xf32>
    %cst_5 = arith.constant 0.000000e+00 : f32
    %6 = vector.broadcast %cst_5 : f32 to vector<16x128xf32>
    %7 = arith.maximumf %5, %6 : vector<16x128xf32>
    %c0_6 = arith.constant 0 : index
    %c0_7 = arith.constant 0 : index
    %8 = vector.load %arg4[%c0_6, %c0_7] : memref<128x128xf32, #tpu.memory_space<vmem>>, vector<128x128xf32>
    %cst_8 = arith.constant dense<0.000000e+00> : vector<16x128xf32>
    %9 = tpu.matmul %7, %8, %cst_8 {dimension_numbers = #tpu.dot_dimension_numbers<[1], [0], [0], [1], [0, 0, 1, 1], [], []>} : vector<16x128xf32>, vector<128x128xf32>, vector<16x128xf32> -> vector<16x128xf32>
    %c0_9 = arith.constant 0 : index
    %c0_10 = arith.constant 0 : index
    %10 = vector.load %arg5[%c0_9, %c0_10] : memref<1x128xf32, #tpu.memory_space<vmem>>, vector<1x128xf32>
    %11 = vector.broadcast %10 : vector<1x128xf32> to vector<16x128xf32>
    %12 = arith.addf %9, %11 : vector<16x128xf32>
    %c0_11 = arith.constant 0 : index
    %c0_12 = arith.constant 0 : index
    %13 = vector.load %arg6[%c0_11, %c0_12] : memref<16x128xf32, #tpu.memory_space<vmem>>, vector<16x128xf32>
    tpu.vector_store %arg6[%c0_11, %c0_12], %12 {strides = array<i32>} : memref<16x128xf32, #tpu.memory_space<vmem>>, vector<16x128xf32>,
    return
  }
  func.func @transform_0(%arg0: i32) -> (i32, i32) {
    %c0_i32 = arith.constant 0 : i32
    %c0_i32_0 = arith.constant 0 : i32
    return %arg0, %c0_i32 : i32, i32
  }
  func.func @transform_1(%arg0: i32) -> (i32, i32) {
    %c0_i32 = arith.constant 0 : i32
    %c0_i32_0 = arith.constant 0 : i32
    %c0_i32_1 = arith.constant 0 : i32
    return %c0_i32, %c0_i32_0 : i32, i32
  }
  func.func @transform_2(%arg0: i32) -> (i32, i32) {
    %c0_i32 = arith.constant 0 : i32
    %c0_i32_0 = arith.constant 0 : i32
    %c0_i32_1 = arith.constant 0 : i32
    return %c0_i32, %c0_i32_0 : i32, i32
  }
  func.func @transform_3(%arg0: i32) -> (i32, i32) {
    %c0_i32 = arith.constant 0 : i32
    %c0_i32_0 = arith.constant 0 : i32
    %c0_i32_1 = arith.constant 0 : i32
    return %c0_i32, %c0_i32_0 : i32, i32
  }
  func.func @transform_4(%arg0: i32) -> (i32, i32) {
    %c0_i32 = arith.constant 0 : i32
    %c0_i32_0 = arith.constant 0 : i32
    %c0_i32_1 = arith.constant 0 : i32
    return %c0_i32, %c0_i32_0 : i32, i32
  }
  func.func @transform_5(%arg0: i32) -> (i32, i32) {
    %c0_i32 = arith.constant 0 : i32
    %c0_i32_0 = arith.constant 0 : i32
    return %arg0, %c0_i32 : i32, i32
  }
}

</mosaic_0001>

<llo_original>
// kernel: ffn_forward.1
$region0: #{ffn_forward.1}
  #allocation0 [shape = 'u32[]', space=smem, size = 0x4, offset = 0x4, fixed_abs, tag = 'smem constant byte address 0x4 - core index']
  #allocation1 [shape = 'u32[72,128]{1,0:T(1,128)}', space=vmem, size = 0x9000, scoped, tag = 'internal scratch']
  %s0 = inlined_call_operand.vmem [shape: f32[16,128], index: 0, kind: input, shape index: {}]
  %s1 = inlined_call_operand.vmem [shape: f32[128,128], index: 1, kind: input, shape index: {}]
  %s2 = inlined_call_operand.vmem [shape: f32[1,128], index: 2, kind: input, shape index: {}]
  %s3 = inlined_call_operand.vmem [shape: f32[128,128], index: 3, kind: input, shape index: {}]
  %s4 = inlined_call_operand.vmem [shape: f32[1,128], index: 4, kind: input, shape index: {}]
  %s5 = inlined_call_operand.vmem [shape: f32[16,128], index: 5, kind: output, shape index: {}]
  %s6 = sld [smem:[#allocation0]]
  $region30: #{ffn_forward.1} parent=0
    _
  %s8 = ssub.s32 1, %s6
  %s9 = scalar_select 0, %s8, %s6
  // Predicated region
  $region2: #{ffn_forward.1} parent=0 // pred_check
    _
  $region3: #{ffn_forward.1} parent=0 // pred_check_branch
    %11 = sbr.rel (0) target = $region5
  $region4: #{ffn_forward.1} parent=0 // pred_region
    _
  $region5: #{ffn_forward.1} parent=0 // pred_fallthru
    _
  // Predicated region
  $region6: #{ffn_forward.1} parent=0 // pred_check
    _
  $region7: #{ffn_forward.1} parent=0 // pred_check_branch
    %13 = sbr.rel (0) target = $region9
  $region8: #{ffn_forward.1} parent=0 // pred_region
    _
  $region9: #{ffn_forward.1} parent=0 // pred_fallthru
    _
  // Predicated region
  $region10: #{ffn_forward.1} parent=0 // pred_check
    _
  $region11: #{ffn_forward.1} parent=0 // pred_check_branch
    %15 = sbr.rel (0) target = $region13
  $region12: #{ffn_forward.1} parent=0 // pred_region
    _
  $region13: #{ffn_forward.1} parent=0 // pred_fallthru
    _
  // Predicated region
  $region14: #{ffn_forward.1} parent=0 // pred_check
    _
  $region15: #{ffn_forward.1} parent=0 // pred_check_branch
    %17 = sbr.rel (0) target = $region17
  $region16: #{ffn_forward.1} parent=0 // pred_region
    _
  $region17: #{ffn_forward.1} parent=0 // pred_fallthru
    _
  // Predicated region
  $region18: #{ffn_forward.1} parent=0 // pred_check
    _
  $region19: #{ffn_forward.1} parent=0 // pred_check_branch
    %19 = sbr.rel (0) target = $region21
  $region20: #{ffn_forward.1} parent=0 // pred_region
    _
  $region21: #{ffn_forward.1} parent=0 // pred_fallthru
    _
  %v20 = vld [vmem:[%s0] sm:$0xff]
  %v21 = vld [vmem:[%s0 + $0x8] sm:$0xff]
  %v22 = vld [vmem:[%s1] sm:$0xff]
  %v23 = vld [vmem:[%s1 + $0x8] sm:$0xff]
  %v24 = vld [vmem:[%s1 + $0x10] sm:$0xff]
  %v25 = vld [vmem:[%s1 + $0x18] sm:$0xff]
  %v26 = vld [vmem:[%s1 + $0x20] sm:$0xff]
  %v27 = vld [vmem:[%s1 + $0x28] sm:$0xff]
  %v28 = vld [vmem:[%s1 + $0x30] sm:$0xff]
  %v29 = vld [vmem:[%s1 + $0x38] sm:$0xff]
  %v30 = vld [vmem:[%s1 + $0x40] sm:$0xff]
  %v31 = vld [vmem:[%s1 + $0x48] sm:$0xff]
  %v32 = vld [vmem:[%s1 + $0x50] sm:$0xff]
  %v33 = vld [vmem:[%s1 + $0x58] sm:$0xff]
  %v34 = vld [vmem:[%s1 + $0x60] sm:$0xff]
  %v35 = vld [vmem:[%s1 + $0x68] sm:$0xff]
  %v36 = vld [vmem:[%s1 + $0x70] sm:$0xff]
  %v37 = vld [vmem:[%s1 + $0x78] sm:$0xff]
  %v38 = vld [vmem:[%s2] sm:$0x1]
  %v40 = vperm.slane %v38, 0
  %42 = vmatpush.msra.mxu0 %v37
  %43 = vmatpush.msra.mxu0 %v36
  %44 = vmatpush.msra.mxu0 %v35
  %45 = vmatpush.msra.mxu0 %v34
  %46 = vmatpush.msra.mxu0 %v33
  %47 = vmatpush.msra.mxu0 %v32
  %48 = vmatpush.msra.mxu0 %v31
  %49 = vmatpush.msra.mxu0 %v30
  %50 = vmatpush.msra.mxu0 %v29
  %51 = vmatpush.msra.mxu0 %v28
  %52 = vmatpush.msra.mxu0 %v27
  %53 = vmatpush.msra.mxu0 %v26
  %54 = vmatpush.msra.mxu0 %v25
  %55 = vmatpush.msra.mxu0 %v24
  %56 = vmatpush.msra.mxu0 %v23
  %57 = vmatpush.msra.mxu0 %v22
  %58 = vmatmul.f32.gmra.mxu0 %v20
  %v59 = vpop.f32.mrf.mxu0
  %v60 = vadd.f32 %v40, %v59
  %61 = vmatmul.f32.gmra.mxu0 %v21
  %v62 = vpop.f32.mrf.mxu0
  %v63 = vadd.f32 %v40, %v62
  %64 = vdwg.mxu0
  %v65 = vmax.f32 %v60, 0.0
  %v66 = vmax.f32 %v63, 0.0
  %v67 = vld [vmem:[%s3] sm:$0xff]
  %v68 = vld [vmem:[%s3 + $0x8] sm:$0xff]
  %v69 = vld [vmem:[%s3 + $0x10] sm:$0xff]
  %v70 = vld [vmem:[%s3 + $0x18] sm:$0xff]
  %v71 = vld [vmem:[%s3 + $0x20] sm:$0xff]
  %v72 = vld [vmem:[%s3 + $0x28] sm:$0xff]
  %v73 = vld [vmem:[%s3 + $0x30] sm:$0xff]
  %v74 = vld [vmem:[%s3 + $0x38] sm:$0xff]
  %v75 = vld [vmem:[%s3 + $0x40] sm:$0xff]
  %v76 = vld [vmem:[%s3 + $0x48] sm:$0xff]
  %v77 = vld [vmem:[%s3 + $0x50] sm:$0xff]
  %v78 = vld [vmem:[%s3 + $0x58] sm:$0xff]
  %v79 = vld [vmem:[%s3 + $0x60] sm:$0xff]
  %v80 = vld [vmem:[%s3 + $0x68] sm:$0xff]
  %v81 = vld [vmem:[%s3 + $0x70] sm:$0xff]
  %v82 = vld [vmem:[%s3 + $0x78] sm:$0xff]
  %v83 = vld [vmem:[%s4] sm:$0x1]
  %v85 = vperm.slane %v83, 0
  %87 = vmatpush.msra.mxu0 %v82
  %88 = vmatpush.msra.mxu0 %v81
  %89 = vmatpush.msra.mxu0 %v80
  %90 = vmatpush.msra.mxu0 %v79
  %91 = vmatpush.msra.mxu0 %v78
  %92 = vmatpush.msra.mxu0 %v77
  %93 = vmatpush.msra.mxu0 %v76
  %94 = vmatpush.msra.mxu0 %v75
  %95 = vmatpush.msra.mxu0 %v74
  %96 = vmatpush.msra.mxu0 %v73
  %97 = vmatpush.msra.mxu0 %v72
  %98 = vmatpush.msra.mxu0 %v71
  %99 = vmatpush.msra.mxu0 %v70
  %100 = vmatpush.msra.mxu0 %v69
  %101 = vmatpush.msra.mxu0 %v68
  %102 = vmatpush.msra.mxu0 %v67
  %103 = vmatmul.f32.gmra.mxu0 %v65
  %v104 = vpop.f32.mrf.mxu0
  %v105 = vadd.f32 %v85, %v104
  %106 = vmatmul.f32.gmra.mxu0 %v66
  %v107 = vpop.f32.mrf.mxu0
  %v108 = vadd.f32 %v85, %v107
  %109 = vdwg.mxu0
  %110 = vst [vmem:[%s5] sm:$0xff] %v105
  %111 = vst [vmem:[%s5 + $0x8] sm:$0xff] %v108
  // Predicated region
  $region22: #{ffn_forward.1} parent=0 // pred_check
    _
  $region23: #{ffn_forward.1} parent=0 // pred_check_branch
    %113 = sbr.rel (0) target = $region25
  $region24: #{ffn_forward.1} parent=0 // pred_region
    _
  $region25: #{ffn_forward.1} parent=0 // pred_fallthru
    _
  // Predicated region
  $region26: #{ffn_forward.1} parent=0 // pred_check
    _
  $region27: #{ffn_forward.1} parent=0 // pred_check_branch
    %115 = sbr.rel (0) target = $region29
  $region28: #{ffn_forward.1} parent=0 // pred_region
    _
  $region29: #{ffn_forward.1} parent=0 // pred_fallthru
    _

</llo_original>
